<compile_context>
chip_gen: v7x
topology: tpu7x:2x2x1
jax: 0.10.0
libtpu: 0.0.40
codegen_flags: <defaults>
</compile_context>

<pallas_src>
import functools

import jax
import jax.numpy as jnp
from jax.experimental import pallas as pl
from jax.experimental.pallas import tpu as pltpu

LANE = 128
SUBLANE = 8
MAX_TILE_ROWS = 8192          # 8192 x 128 x 4B = 4 MiB per f32 input block
VMEM_LIMIT_BYTES = 48 * 1024 * 1024


def _num_tensorcore_shards():
    """2 shards only on 2-TC chips (v7x); 1 elsewhere (v5e/v6e)."""
    try:
        kind = jax.devices()[0].device_kind.lower()
        if "v7" in kind:
            return 2
    except Exception:
        pass
    return 1


def _huber_sum_kernel(x_ref, y_ref, o_ref, *, beta, rows, block_rows,
                      steps_per_shard, steps_total, need_mask):
    p = pl.program_id(0)   # shard axis (one per TensorCore on v7x)
    i = pl.program_id(1)   # row-tile step within shard (reduction axis)

    @pl.when(i == 0)
    def _():
        o_ref[...] = jnp.zeros_like(o_ref)

    inv_beta = jnp.float32(1.0 / beta)
    # One vsub + one vmul (fused 1/beta scale).
    d = (x_ref[...].astype(jnp.float32) - y_ref[...].astype(jnp.float32)) * inv_beta
    ad = jnp.abs(d)
    # Branch-free smooth_l1 with beta=1 (inputs pre-scaled by 1/beta):
    #   |d| < 1 : h=|d| -> 0.5*d^2 ;  |d| >= 1 : h=1 -> |d| - 0.5
    h = jnp.minimum(ad, 1.0)
    elem = h * (ad - 0.5 * h)

    sub_tiles = block_rows // SUBLANE   # block_rows is always a multiple of 8

    def _partial(e):
        # (block_rows, 128) -> (tiles, 8, 128) -> sum over tiles: pure vreg adds.
        return e.reshape(sub_tiles, SUBLANE, LANE).sum(axis=0)

    if need_mask:
        s_lin = p * steps_per_shard + i   # unclamped global tile index

        # Hot path: every full tile accumulates unmasked.
        @pl.when(s_lin < steps_total - 1)
        def _():
            o_ref[...] += _partial(elem)

        # Cold path: only the (possibly ragged) last tile and any clamped
        # duplicate tiles of a ragged shard pay for the row mask.
        @pl.when(s_lin >= steps_total - 1)
        def _():
            r = jax.lax.broadcasted_iota(jnp.int32, (block_rows, LANE), 0)
            global_row = s_lin * block_rows + r
            masked = jnp.where(global_row < rows, elem, 0.0)
            o_ref[...] += _partial(masked)
    else:
        o_ref[...] += _partial(elem)


def huber_loss(outputs, targets, beta=0.1, reduction="mean"):
    """Equivalent to: F.smooth_l1_loss(outputs/beta, targets/beta, reduction) * beta."""
    assert outputs.shape == targets.shape
    n = outputs.size

    x = outputs.reshape(-1)
    y = targets.reshape(-1)

    # Pad the flat length up to a multiple of 8*128 only when needed, so the
    # (rows, 128) view has a sublane-aligned row count.  Padded slots have
    # x == y == 0 and contribute exactly 0 to the loss.
    chunk = SUBLANE * LANE
    rem = n % chunk
    if rem:
        pad = chunk - rem
        x = jnp.pad(x, (0, pad))
        y = jnp.pad(y, (0, pad))

    rows = x.size // LANE                 # multiple of 8
    x2 = x.reshape(rows, LANE)
    y2 = y.reshape(rows, LANE)

    block_rows = min(rows, MAX_TILE_ROWS)  # multiple of 8 either way
    steps_total = pl.cdiv(rows, block_rows)

    num_shards = _num_tensorcore_shards() if steps_total > 1 else 1
    if steps_total < num_shards:
        num_shards = 1
    steps_per_shard = pl.cdiv(steps_total, num_shards)

    ragged_rows = (rows % block_rows) != 0
    ragged_shard = (num_shards * steps_per_shard) != steps_total
    need_mask = ragged_rows or ragged_shard

    def in_map(p, i):
        s = p * steps_per_shard + i
        if ragged_shard:
            # Keep the DMA block index in range; the kernel's row mask zeroes
            # any contribution from a clamped (already-counted) block.
            s = jnp.minimum(s, steps_total - 1)
        return (s, 0)

    kernel = functools.partial(
        _huber_sum_kernel,
        beta=float(beta),
        rows=rows,
        block_rows=block_rows,
        steps_per_shard=steps_per_shard,
        steps_total=steps_total,
        need_mask=need_mask,
    )

    # Shard axis only maps to separate TensorCores with CORE_PARALLEL (v7x);
    # on 1-TC chips the shard axis is size 1 and plain ARBITRARY is used.
    dims = (pltpu.CORE_PARALLEL if num_shards > 1 else pltpu.ARBITRARY,
            pltpu.ARBITRARY)

    partials = pl.pallas_call(
        kernel,
        out_shape=jax.ShapeDtypeStruct((num_shards * SUBLANE, LANE), jnp.float32),
        grid_spec=pltpu.PrefetchScalarGridSpec(
            num_scalar_prefetch=0,
            grid=(num_shards, steps_per_shard),
            in_specs=[
                pl.BlockSpec((block_rows, LANE), in_map),
                pl.BlockSpec((block_rows, LANE), in_map),
            ],
            out_specs=pl.BlockSpec((SUBLANE, LANE), lambda p, i: (p, 0)),
        ),
        compiler_params=pltpu.CompilerParams(
            dimension_semantics=dims,
            vmem_limit_bytes=VMEM_LIMIT_BYTES,
        ),
    )(x2, y2)

    total = jnp.sum(partials)   # single cross-lane reduce, done once in JAX

    if reduction == "mean":
        return total * jnp.float32(beta) / jnp.float32(n)
    elif reduction == "sum":
        return total * jnp.float32(beta)
    else:
        # TODO(synk): reduction='none' (elementwise output) not implemented; module default is 'mean'.
        raise NotImplementedError("reduction='none' not supported in this kernel")


def _ref_huber_loss(outputs, targets, beta=0.1):
    # pure-JAX reference of F.smooth_l1_loss(x/beta, y/beta, 'mean') * beta
    d = outputs / beta - targets / beta
    ad = jnp.abs(d)
    elem = jnp.where(ad < 1.0, 0.5 * d * d, ad - 0.5)
    return jnp.mean(elem) * beta


if __name__ == "__main__":
    key = jax.random.PRNGKey(0)
    k1, k2 = jax.random.split(key)
    # small shapes consistent with a typical regression head output
    outputs = jax.random.normal(k1, (2, 4, 16, 16), dtype=jnp.float32)
    targets = jax.random.normal(k2, (2, 4, 16, 16), dtype=jnp.float32)

    loss = huber_loss(outputs, targets, beta=0.1, reduction="mean")
    loss = jax.block_until_ready(loss)

    ref = _ref_huber_loss(outputs, targets, beta=0.1)
    assert jnp.allclose(loss, ref, rtol=1e-5, atol=1e-6), (loss, ref)

    # second check: non-multiple-of-1024 length exercises the pad + mask paths
    o2 = jax.random.normal(k1, (3, 5, 7, 11), dtype=jnp.float32)
    t2 = jax.random.normal(k2, (3, 5, 7, 11), dtype=jnp.float32)
    loss2 = jax.block_until_ready(huber_loss(o2, t2, beta=0.1, reduction="mean"))
    ref2 = _ref_huber_loss(o2, t2, beta=0.1)
    assert jnp.allclose(loss2, ref2, rtol=1e-5, atol=1e-6), (loss2, ref2)

    print("KERNEL_OK")
</pallas_src>

<mosaic_0001>
module attributes {stable_mosaic.version = 11 : i64} {
  func.func @_huber_sum_kernel(%arg0: i32, %arg1: i32, %arg2: memref<16x128xf32, #tpu.memory_space<vmem>>, %arg3: memref<16x128xf32, #tpu.memory_space<vmem>>, %arg4: memref<8x128xf32, #tpu.memory_space<vmem>>) attributes {dimension_semantics = [#tpu.dimension_semantics<arbitrary>, #tpu.dimension_semantics<arbitrary>], iteration_bounds = array<i64: 1, 1>, scalar_prefetch = 0 : i64, scratch_operands = 0 : i64, tpu.core_type = #tpu.core_type<tc>, window_params = [{transform_indices = @transform_0, window_bounds = array<i64: 16, 128>}, {transform_indices = @transform_1, window_bounds = array<i64: 16, 128>}, {transform_indices = @transform_2, window_bounds = array<i64: 8, 128>}]} {
    %c0_i32 = arith.constant 0 : i32
    %0 = arith.cmpi eq, %arg1, %c0_i32 : i32
    %1 = arith.extui %0 : i1 to i32
    %c0_i32_0 = arith.constant 0 : i32
    %2 = arith.cmpi ne, %1, %c0_i32_0 : i32
    scf.if %2 {
      %cst_11 = arith.constant 0.000000e+00 : f32
      %20 = vector.broadcast %cst_11 : f32 to vector<8x128xf32>
      %c0_12 = arith.constant 0 : index
      %c0_13 = arith.constant 0 : index
      %21 = vector.load %arg4[%c0_12, %c0_13] : memref<8x128xf32, #tpu.memory_space<vmem>>, vector<8x128xf32>
      tpu.vector_store %arg4[%c0_12, %c0_13], %20 {strides = array<i32>} : memref<8x128xf32, #tpu.memory_space<vmem>>, vector<8x128xf32>,
    } else {
    }
    %c0 = arith.constant 0 : index
    %c0_1 = arith.constant 0 : index
    %3 = vector.load %arg2[%c0, %c0_1] : memref<16x128xf32, #tpu.memory_space<vmem>>, vector<16x128xf32>
    %c0_2 = arith.constant 0 : index
    %c0_3 = arith.constant 0 : index
    %4 = vector.load %arg3[%c0_2, %c0_3] : memref<16x128xf32, #tpu.memory_space<vmem>>, vector<16x128xf32>
    %5 = arith.subf %3, %4 : vector<16x128xf32>
    %cst = arith.constant 1.000000e+01 : f32
    %6 = vector.broadcast %cst : f32 to vector<16x128xf32>
    %7 = arith.mulf %5, %6 : vector<16x128xf32>
    %8 = math.absf %7 : vector<16x128xf32>
    %cst_4 = arith.constant 1.000000e+00 : f32
    %9 = vector.broadcast %cst_4 : f32 to vector<16x128xf32>
    %10 = arith.minimumf %8, %9 : vector<16x128xf32>
    %cst_5 = arith.constant 5.000000e-01 : f32
    %11 = vector.broadcast %cst_5 : f32 to vector<16x128xf32>
    %12 = arith.mulf %11, %10 : vector<16x128xf32>
    %13 = arith.subf %8, %12 : vector<16x128xf32>
    %14 = arith.mulf %10, %13 : vector<16x128xf32>
    %c0_6 = arith.constant 0 : index
    %c0_7 = arith.constant 0 : index
    %15 = vector.load %arg4[%c0_6, %c0_7] : memref<8x128xf32, #tpu.memory_space<vmem>>, vector<8x128xf32>
    %16 = vector.shape_cast %14 : vector<16x128xf32> to vector<2x8x128xf32>
    %cst_8 = arith.constant dense<0.000000e+00> : vector<8x128xf32>
    %17 = vector.multi_reduction <add>, %16, %cst_8 [0] : vector<2x8x128xf32> to vector<8x128xf32>
    %18 = arith.addf %15, %17 : vector<8x128xf32>
    %c0_9 = arith.constant 0 : index
    %c0_10 = arith.constant 0 : index
    %19 = vector.load %arg4[%c0_9, %c0_10] : memref<8x128xf32, #tpu.memory_space<vmem>>, vector<8x128xf32>
    tpu.vector_store %arg4[%c0_9, %c0_10], %18 {strides = array<i32>} : memref<8x128xf32, #tpu.memory_space<vmem>>, vector<8x128xf32>,
    return
  }
  func.func @transform_0(%arg0: i32, %arg1: i32) -> (i32, i32) {
    %c1_i32 = arith.constant 1 : i32
    %0 = arith.muli %arg0, %c1_i32 : i32
    %1 = arith.addi %0, %arg1 : i32
    %c0_i32 = arith.constant 0 : i32
    %c0_i32_0 = arith.constant 0 : i32
    return %1, %c0_i32 : i32, i32
  }
  func.func @transform_1(%arg0: i32, %arg1: i32) -> (i32, i32) {
    %c1_i32 = arith.constant 1 : i32
    %0 = arith.muli %arg0, %c1_i32 : i32
    %1 = arith.addi %0, %arg1 : i32
    %c0_i32 = arith.constant 0 : i32
    %c0_i32_0 = arith.constant 0 : i32
    return %1, %c0_i32 : i32, i32
  }
  func.func @transform_2(%arg0: i32, %arg1: i32) -> (i32, i32) {
    %c0_i32 = arith.constant 0 : i32
    %c0_i32_0 = arith.constant 0 : i32
    return %arg0, %c0_i32 : i32, i32
  }
}

</mosaic_0001>

<llo_original>
// kernel: tpu_custom_call.1
$region0: #{tpu_custom_call.1}
  #allocation0 [shape = 'u32[]', space=smem, size = 0x4, offset = 0x4, fixed_abs, tag = 'smem constant byte address 0x4 - core index']
  #allocation1 [shape = 'u32[144,128]{1,0:T(1,128)}', space=vmem, size = 0x12000, scoped, tag = 'internal scratch']
  %s0 = inlined_call_operand.hbm [shape: f32[16,128], index: 0, kind: input, shape index: {}]
  %s1 = inlined_call_operand.hbm [shape: f32[16,128], index: 1, kind: input, shape index: {}]
  %s2 = inlined_call_operand.hbm [shape: f32[8,128], index: 2, kind: output, shape index: {}]
  %s3 = sld [smem:[#allocation0]]
  $region30: #{tpu_custom_call.1} parent=0
    _
  %s5 = ssub.s32 1, %s3
  %s6 = scalar_select 0, %s5, %s3
  $region1: #{tpu_custom_call.1} parent=0
    #allocation2 [shape = 'u8[8192]{0}', space=vmem, size = 0x2000, scoped, tag = 'input window, operand 0, single buffered']
    #allocation3 [shape = 's32[1]{0}', space=sflag, size = 0x4, scoped, tag = 'scoped memory for tpu_custom_call.1']
    #allocation4 [shape = 's32[1]{0}', space=sflag, size = 0x4, scoped, tag = 'scoped memory for tpu_custom_call.1']
    #allocation5 [shape = 'u8[8192]{0}', space=vmem, size = 0x2000, scoped, tag = 'input window, operand 1, single buffered']
    #allocation6 [shape = 's32[1]{0}', space=sflag, size = 0x4, scoped, tag = 'scoped memory for tpu_custom_call.1']
    #allocation7 [shape = 'u8[4096]{0}', space=vmem, size = 0x1000, scoped, tag = 'output window, operand 0, single buffered']
    %7 = vsyncpa [#allocation3], 0
    %8 = vsyncpa [#allocation6], 0
    %9 = vsyncpa [#allocation4], 0
    // Predicated region
    $region2: #{tpu_custom_call.1} parent=1 // pred_check
      _
    $region3: #{tpu_custom_call.1} parent=1 // pred_check_branch
      %11 = sbr.rel (0) target = $region5
    $region4: #{tpu_custom_call.1} parent=1 // pred_region
      %s12 = sadd.s32 0, 0
      %s13 = smul.u32 2, %s12
      %s15 = ssub.s32 256, 256
      %16 = vsyncadd [#allocation3], %s15
      %s17 = smul.addr %s13, 128
      %s18 = scalar_lea.hbm %s0, %s17
      %s19 = sshll.u32 [#allocation2], 4
      %s20 = int_to_ptr.vmem [resolvable:$true] %s19
      %25 = dma.hbm_to_vmem [thread:$0]  %s18, 256, %s20, [#allocation3], 128, 128, 8
    $region5: #{tpu_custom_call.1} parent=1 // pred_fallthru
      _
    // Predicated region
    $region6: #{tpu_custom_call.1} parent=1 // pred_check
      _
    $region7: #{tpu_custom_call.1} parent=1 // pred_check_branch
      %27 = sbr.rel (0) target = $region9
    $region8: #{tpu_custom_call.1} parent=1 // pred_region
      %s28 = sadd.s32 0, 0
      %s29 = smul.u32 2, %s28
      %s31 = ssub.s32 256, 256
      %32 = vsyncadd [#allocation6], %s31
      %s33 = smul.addr %s29, 128
      %s34 = scalar_lea.hbm %s1, %s33
      %s35 = sshll.u32 [#allocation5], 4
      %s36 = int_to_ptr.vmem [resolvable:$true] %s35
      %41 = dma.hbm_to_vmem [thread:$0]  %s34, 256, %s36, [#allocation6], 128, 128, 8
    $region9: #{tpu_custom_call.1} parent=1 // pred_fallthru
      _
    // Predicated region
    $region10: #{tpu_custom_call.1} parent=1 // pred_check
      _
    $region11: #{tpu_custom_call.1} parent=1 // pred_check_branch
      %43 = sbr.rel (0) target = $region13
    $region12: #{tpu_custom_call.1} parent=1 // pred_region
      %44 = dma.done [#allocation3], 256
    $region13: #{tpu_custom_call.1} parent=1 // pred_fallthru
      _
    // Predicated region
    $region14: #{tpu_custom_call.1} parent=1 // pred_check
      _
    $region15: #{tpu_custom_call.1} parent=1 // pred_check_branch
      %46 = sbr.rel (0) target = $region17
    $region16: #{tpu_custom_call.1} parent=1 // pred_region
      %47 = dma.done [#allocation6], 256
    $region17: #{tpu_custom_call.1} parent=1 // pred_fallthru
      _
    %s48 = sadd.s32 0, 0
    %s49 = smul.u32 2, %s48
    %s50 = sadd.s32 0, 0
    %s51 = smul.u32 2, %s50
    %p52 = scmp.eq.s32.totalorder 0, 0
    // Predicated region
    $region18: #{tpu_custom_call.1} parent=1 // pred_check
      %p53 = pneg %p52
    $region19: #{tpu_custom_call.1} parent=1 // pred_check_branch
      %55 = sbr.rel (%p53) target = $region21
    $region20: #{tpu_custom_call.1} parent=1 // pred_region
      %56 = vst [vmem:[#allocation7] sm:$0xff] 0.0
    $region21: #{tpu_custom_call.1} parent=1 // pred_fallthru
      _
    %v57 = vld [vmem:[#allocation2] sm:$0xff]
    %v58 = vld [vmem:[#allocation2 + $0x8] sm:$0xff]
    %v59 = vld [vmem:[#allocation5] sm:$0xff]
    %v60 = vld [vmem:[#allocation5 + $0x8] sm:$0xff]
    %v61 = vsub.f32 %v57, %v59
    %v62 = vsub.f32 %v58, %v60
    %v63 = vmul.f32 %v61, 10.0
    %v64 = vmul.f32 %v62, 10.0
    %v65 = vand.u32 2147483647, %v63
    %v66 = vand.u32 2147483647, %v64
    %v67 = vmin.f32 %v65, 1.0
    %v68 = vmin.f32 %v66, 1.0
    %v69 = vmul.f32 %v67, 0.5
    %v70 = vmul.f32 %v68, 0.5
    %v71 = vsub.f32 %v65, %v69
    %v72 = vsub.f32 %v66, %v70
    %v73 = vmul.f32 %v67, %v71
    %v74 = vmul.f32 %v68, %v72
    %v75 = vld [vmem:[#allocation7] sm:$0xff]
    %v76 = vadd.f32 %v73, %v74
    %v77 = vadd.f32 %v75, %v76
    %78 = vst [vmem:[#allocation7] sm:$0xff] %v77
    // Predicated region
    $region22: #{tpu_custom_call.1} parent=1 // pred_check
      _
    $region23: #{tpu_custom_call.1} parent=1 // pred_check_branch
      %80 = sbr.rel (0) target = $region25
    $region24: #{tpu_custom_call.1} parent=1 // pred_region
      %s82 = ssub.s32 128, 128
      %83 = vsyncadd [#allocation4], %s82
      %s85 = sshll.u32 [#allocation7], 4
      %s86 = int_to_ptr.vmem [resolvable:$true] %s85
      %88 = dma.vmem_to_hbm [thread:$0]  %s86, 128, %s2, [#allocation4]
    $region25: #{tpu_custom_call.1} parent=1 // pred_fallthru
      _
    // Predicated region
    $region26: #{tpu_custom_call.1} parent=1 // pred_check
      _
    $region27: #{tpu_custom_call.1} parent=1 // pred_check_branch
      %90 = sbr.rel (0) target = $region29
    $region28: #{tpu_custom_call.1} parent=1 // pred_region
      %91 = dma.done [#allocation4], 128
    $region29: #{tpu_custom_call.1} parent=1 // pred_fallthru
      _
    %92 = vsyncpa [#allocation3], 1
    %93 = vsyncpa [#allocation6], 1
    %94 = vsyncpa [#allocation4], 1

</llo_original>
